<compile_context>
chip_gen: v7x
topology: tpu7x:2x2x1
jax: 0.10.0
libtpu: 0.0.40
codegen_flags: <defaults>
</compile_context>

<pallas_src>
from functools import partial

import jax
import jax.numpy as jnp
from jax.experimental import pallas as pl
from jax.experimental.pallas import tpu as pltpu

LANE = 128                    # feature dims padded to one full vreg lane width
NODE_ALIGN = 256              # node-count padding granularity
RESIDENT_F_MAX_NODES = 16384  # resident feature slab cap (~8 MiB dbl-buffered bf16)


def _round_up(x, m):
    return ((x + m - 1) // m) * m


def _choose_tiles(n_pad):
    """Pick (tm, tk) that both divide n_pad.  tm stays 256 unless there are
    at least two row tiles at 512 (so the 'parallel' axis really splits across
    v7x's two TensorCores); tk grows up to 2048 to amortize per-step overhead
    and the accumulator read-modify-write."""
    tm = 512 if (n_pad >= 1024 and n_pad % 512 == 0) else 256
    tk = NODE_ALIGN
    for cand in (2048, 1024, 512):
        if n_pad % cand == 0:
            tk = cand
            break
    return tm, tk


def _gcn_layer_kernel(col_ref, cnt_ref, a_ref, f_ref, w_ref, b_ref, o_ref,
                      acc_ref, *, apply_relu, resident_f, tk):
    """Grid = (row tiles, col-tile slots).  Per (i, k):
         if k < count[i]:  acc += A[i, tbl[i,k]] @ F[tbl[i,k]]
         at k == last:     out = relu?(acc @ W + b)
    """
    i = pl.program_id(0)
    k = pl.program_id(1)

    @pl.when(k == 0)
    def _():
        acc_ref[...] = jnp.zeros_like(acc_ref)

    @pl.when(k < cnt_ref[i])
    def _():
        if resident_f:
            c = col_ref[i, k]
            off = pl.multiple_of(c * tk, tk)
            f_tile = f_ref[pl.ds(off, tk), :]
        else:
            f_tile = f_ref[...]
        # bf16 x bf16 -> f32 accumulate on the MXU.
        acc_ref[...] += jnp.dot(a_ref[...], f_tile,
                                preferred_element_type=jnp.float32)

    @pl.when(k == pl.num_programs(1) - 1)
    def _():
        # bf16 x bf16 finalize matmul (single-pass MXU mode), f32 accumulate.
        out = jnp.dot(acc_ref[...].astype(w_ref.dtype), w_ref[...],
                      preferred_element_type=jnp.float32)
        out = out + b_ref[...]                      # bias broadcast over nodes
        if apply_relu:
            out = jnp.maximum(out, 0.0)
        o_ref[...] = out.astype(o_ref.dtype)


def gcn_layer(col_tbl, counts, a_hat, feat, w, b, *, apply_relu, out_dtype,
              tm, tk):
    """One GCNConv layer on padded inputs: (A_hat @ feat) @ w + b (+ ReLU)."""
    n_pad = a_hat.shape[0]
    n_rt = n_pad // tm
    n_ct = n_pad // tk
    resident_f = n_pad <= RESIDENT_F_MAX_NODES

    if resident_f:
        # Whole feature slab resident in VMEM; constant index_map -> one DMA.
        f_spec = pl.BlockSpec((n_pad, LANE), lambda i, k, tbl, cnt: (0, 0))
    else:
        # Stream the source-node tile matching the current non-zero A tile.
        f_spec = pl.BlockSpec((tk, LANE), lambda i, k, tbl, cnt: (tbl[i, k], 0))

    return pl.pallas_call(
        partial(_gcn_layer_kernel, apply_relu=apply_relu,
                resident_f=resident_f, tk=tk),
        out_shape=jax.ShapeDtypeStruct((n_pad, LANE), out_dtype),
        grid_spec=pltpu.PrefetchScalarGridSpec(
            num_scalar_prefetch=2,           # col_tbl, counts live in SMEM
            grid=(n_rt, n_ct),
            in_specs=[
                # A_hat tile: data-dependent column tile (block-sparse skip).
                pl.BlockSpec((tm, tk), lambda i, k, tbl, cnt: (i, tbl[i, k])),
                f_spec,                                                # features
                pl.BlockSpec((LANE, LANE), lambda i, k, tbl, cnt: (0, 0)),  # W
                pl.BlockSpec((1, LANE), lambda i, k, tbl, cnt: (0, 0)),     # bias
            ],
            out_specs=pl.BlockSpec((tm, LANE), lambda i, k, tbl, cnt: (i, 0)),
            scratch_shapes=[pltpu.VMEM((tm, LANE), jnp.float32)],
        ),
        compiler_params=pltpu.CompilerParams(
            # row tiles shard across TensorCores (v7x); K reduction stays serial
            dimension_semantics=("parallel", "arbitrary"),
            # worst-case footprint (A dbl-buf 4 MiB + resident F <= 8 MiB +
            # out/acc ~0.75 MiB) ~13 MiB; safe on v5e/v6e/v7x.
            vmem_limit_bytes=32 * 1024 * 1024,
        ),
        # TODO(synk): pipeline_mode=pl.Buffered(3) on the A_hat BlockSpec could
        # further hide DMA latency on v7x; left at default double-buffering.
    )(col_tbl, counts, a_hat, feat, w, b)


def build_normalized_adjacency(edge_index, edge_weight, num_nodes, n_pad):
    """Dense symmetric-normalized adjacency with self-loops (PyG gcn_norm),
    scattered directly into the padded (n_pad, n_pad) f32 buffer."""
    row = edge_index[0]          # source nodes
    col = edge_index[1]          # target nodes
    loop = jnp.arange(num_nodes, dtype=edge_index.dtype)
    row = jnp.concatenate([row, loop])
    col = jnp.concatenate([col, loop])
    w = jnp.concatenate(
        [edge_weight, jnp.ones((num_nodes,), edge_weight.dtype)])

    deg = jnp.zeros((num_nodes,), edge_weight.dtype).at[col].add(w)
    deg_inv_sqrt = jnp.where(deg > 0, jax.lax.rsqrt(deg), 0.0)
    norm = deg_inv_sqrt[row] * w * deg_inv_sqrt[col]

    # A_hat[target, source] = norm   =>   out = A_hat @ X
    # Scatter-add in f32 (duplicate edges summed exactly), single bf16 cast later.
    a_hat = jnp.zeros((n_pad, n_pad), jnp.float32).at[col, row].add(norm)
    return a_hat, row, col


def build_tile_tables(src, tgt, n_pad, tm, tk):
    """Per row tile: sorted list of non-zero column-tile indices (padded by
    repeating the last valid entry so skipped steps re-use the same block and
    their DMA is elided) plus the count of valid entries."""
    n_rt = n_pad // tm
    n_ct = n_pad // tk
    ti = (tgt // tm).astype(jnp.int32)   # A_hat row tile (target node)
    tj = (src // tk).astype(jnp.int32)   # A_hat col tile (source node)
    mask = jnp.zeros((n_rt, n_ct), jnp.bool_).at[ti, tj].set(True)

    counts = mask.sum(axis=1).astype(jnp.int32)
    col_ids = jnp.arange(n_ct, dtype=jnp.int32)
    # Unique sort keys: non-zero tiles first (ascending), zero tiles after.
    key = jnp.where(mask, col_ids[None, :], col_ids[None, :] + n_ct)
    order = jnp.argsort(key, axis=1).astype(jnp.int32)
    valid = col_ids[None, :] < counts[:, None]
    last = jnp.take_along_axis(order, jnp.maximum(counts - 1, 0)[:, None],
                               axis=1)
    col_tbl = jnp.where(valid, order, last).astype(jnp.int32)
    return col_tbl, counts


def _pad2(m, r, c, dtype):
    out = jnp.zeros((r, c), dtype)
    return out.at[: m.shape[0], : m.shape[1]].set(m.astype(dtype))


def gcn_forward(x, edge_index, edge_weight, params):
    """Equivalent of GCN.forward (eval mode: dropout p=0.5 is identity)."""
    n, c_in = x.shape
    hidden = params["w1"].shape[1]
    c_out = params["w2"].shape[1]
    # TODO(synk): multi-slab feature path for channel counts > 128.
    assert c_in <= LANE and hidden <= LANE and c_out <= LANE, \
        "feature dims must be <= 128 for the single-slab kernel"

    n_pad = max(_round_up(n, NODE_ALIGN), NODE_ALIGN)
    tm, tk = _choose_tiles(n_pad)

    a_hat_f32, src, tgt = build_normalized_adjacency(
        edge_index, edge_weight, n, n_pad)
    a_pad = a_hat_f32.astype(jnp.bfloat16)       # single quantizing cast
    col_tbl, counts = build_tile_tables(src, tgt, n_pad, tm, tk)

    x_pad = _pad2(x, n_pad, LANE, jnp.bfloat16)

    # Lane-pad weights / biases to 128 (zeros => padded columns stay exactly 0).
    w1 = _pad2(params["w1"], LANE, LANE, jnp.bfloat16)
    b1 = _pad2(params["b1"].reshape(1, -1), 1, LANE, jnp.float32)
    w2 = _pad2(params["w2"], LANE, LANE, jnp.bfloat16)
    b2 = _pad2(params["b2"].reshape(1, -1), 1, LANE, jnp.float32)

    h = gcn_layer(col_tbl, counts, a_pad, x_pad, w1, b1,
                  apply_relu=True, out_dtype=jnp.bfloat16, tm=tm, tk=tk)
    # TODO(synk): training-mode dropout (p=0.5) not implemented; eval mode => identity.
    out = gcn_layer(col_tbl, counts, a_pad, h, w2, b2,
                    apply_relu=False, out_dtype=jnp.float32, tm=tm, tk=tk)
    return out[:n, :c_out]


def init_params(key, in_channels, hidden_channels, out_channels=2):
    k1, k2 = jax.random.split(key)
    # Glorot-style deterministic init (PyG uses glorot for weight, zeros for bias).
    s1 = (6.0 / (in_channels + hidden_channels)) ** 0.5
    s2 = (6.0 / (hidden_channels + out_channels)) ** 0.5
    return {
        "w1": jax.random.uniform(k1, (in_channels, hidden_channels),
                                 jnp.float32, -s1, s1),
        "b1": jnp.zeros((hidden_channels,), jnp.float32),
        "w2": jax.random.uniform(k2, (hidden_channels, out_channels),
                                 jnp.float32, -s2, s2),
        "b2": jnp.zeros((out_channels,), jnp.float32),
    }


if __name__ == "__main__":
    key = jax.random.PRNGKey(0)
    k_x, k_e, k_w, k_p = jax.random.split(key, 4)

    num_nodes = 16
    in_channels = 8
    hidden_channels = 32
    num_edges = 40

    x = jax.random.normal(k_x, (num_nodes, in_channels), jnp.float32)
    edge_index = jax.random.randint(k_e, (2, num_edges), 0, num_nodes,
                                    dtype=jnp.int32)
    edge_weight = jax.random.uniform(k_w, (num_edges,), jnp.float32,
                                     0.1, 1.0)
    params = init_params(k_p, in_channels, hidden_channels)

    out = gcn_forward(x, edge_index, edge_weight, params)
    out = jax.block_until_ready(out)
    assert out.shape == (num_nodes, 2)
    assert jnp.all(jnp.isfinite(out))
    print("KERNEL_OK")
</pallas_src>

<mosaic_0001>
module attributes {stable_mosaic.version = 11 : i64} {
  func.func @_gcn_layer_kernel(%arg0: i32, %arg1: i32, %arg2: memref<1x1xi32, #tpu.memory_space<smem>>, %arg3: memref<1xi32, #tpu.memory_space<smem>>, %arg4: memref<256x256xbf16, #tpu.memory_space<vmem>>, %arg5: memref<256x128xbf16, #tpu.memory_space<vmem>>, %arg6: memref<128x128xbf16, #tpu.memory_space<vmem>>, %arg7: memref<1x128xf32, #tpu.memory_space<vmem>>, %arg8: memref<256x128xbf16, #tpu.memory_space<vmem>>, %arg9: memref<256x128xf32, #tpu.memory_space<vmem>>) attributes {dimension_semantics = [#tpu.dimension_semantics<parallel>, #tpu.dimension_semantics<arbitrary>], iteration_bounds = array<i64: 1, 1>, scalar_prefetch = 2 : i64, scratch_operands = 1 : i64, tpu.core_type = #tpu.core_type<tc>, window_params = [{transform_indices = @transform_0, window_bounds = array<i64: 256, 256>}, {pipeline_mode = #tpu.pipeline_mode<synchronous>, transform_indices = @transform_1, window_bounds = array<i64: 256, 128>}, {pipeline_mode = #tpu.pipeline_mode<synchronous>, transform_indices = @transform_2, window_bounds = array<i64: 128, 128>}, {pipeline_mode = #tpu.pipeline_mode<synchronous>, transform_indices = @transform_3, window_bounds = array<i64: 1, 128>}, {transform_indices = @transform_4, window_bounds = array<i64: 256, 128>}]} {
    %c0_i32 = arith.constant 0 : i32
    %0 = arith.cmpi eq, %arg1, %c0_i32 : i32
    %1 = arith.extui %0 : i1 to i32
    %c0_i32_0 = arith.constant 0 : i32
    %2 = arith.cmpi ne, %1, %c0_i32_0 : i32
    scf.if %2 {
      %cst = arith.constant 0.000000e+00 : f32
      %11 = vector.broadcast %cst : f32 to vector<256x128xf32>
      %c0 = arith.constant 0 : index
      %c0_4 = arith.constant 0 : index
      %12 = vector.load %arg9[%c0, %c0_4] : memref<256x128xf32, #tpu.memory_space<vmem>>, vector<256x128xf32>
      tpu.vector_store %arg9[%c0, %c0_4], %11 {strides = array<i32>} : memref<256x128xf32, #tpu.memory_space<vmem>>, vector<256x128xf32>,
    } else {
    }
    %3 = arith.index_cast %arg0 : i32 to index
    %4 = memref.load %arg3[%3] : memref<1xi32, #tpu.memory_space<smem>>
    %5 = arith.cmpi slt, %arg1, %4 : i32
    %6 = arith.extui %5 : i1 to i32
    %c0_i32_1 = arith.constant 0 : i32
    %7 = arith.cmpi ne, %6, %c0_i32_1 : i32
    scf.if %7 {
      %11 = arith.index_cast %arg0 : i32 to index
      %12 = arith.index_cast %arg1 : i32 to index
      %13 = memref.load %arg2[%11, %12] : memref<1x1xi32, #tpu.memory_space<smem>>
      %c256_i32 = arith.constant 256 : i32
      %14 = arith.muli %13, %c256_i32 : i32
      %15 = tpu.assume_multiple %14, 256 : i32
      %16 = arith.index_cast %15 : i32 to index
      %c0 = arith.constant 0 : index
      %17 = vector.load %arg5[%16, %c0] : memref<256x128xbf16, #tpu.memory_space<vmem>>, vector<256x128xbf16>
      %c0_4 = arith.constant 0 : index
      %c0_5 = arith.constant 0 : index
      %18 = vector.load %arg9[%c0_4, %c0_5] : memref<256x128xf32, #tpu.memory_space<vmem>>, vector<256x128xf32>
      %c0_6 = arith.constant 0 : index
      %c0_7 = arith.constant 0 : index
      %19 = vector.load %arg4[%c0_6, %c0_7] : memref<256x256xbf16, #tpu.memory_space<vmem>>, vector<256x256xbf16>
      %cst = arith.constant dense<0.000000e+00> : vector<256x128xf32>
      %20 = tpu.matmul %19, %17, %cst {dimension_numbers = #tpu.dot_dimension_numbers<[1], [0], [0], [1], [0, 0, 1, 1], [], []>} : vector<256x256xbf16>, vector<256x128xbf16>, vector<256x128xf32> -> vector<256x128xf32>
      %21 = arith.addf %18, %20 : vector<256x128xf32>
      %c0_8 = arith.constant 0 : index
      %c0_9 = arith.constant 0 : index
      %22 = vector.load %arg9[%c0_8, %c0_9] : memref<256x128xf32, #tpu.memory_space<vmem>>, vector<256x128xf32>
      tpu.vector_store %arg9[%c0_8, %c0_9], %21 {strides = array<i32>} : memref<256x128xf32, #tpu.memory_space<vmem>>, vector<256x128xf32>,
    } else {
    }
    %c0_i32_2 = arith.constant 0 : i32
    %8 = arith.cmpi eq, %arg1, %c0_i32_2 : i32
    %9 = arith.extui %8 : i1 to i32
    %c0_i32_3 = arith.constant 0 : i32
    %10 = arith.cmpi ne, %9, %c0_i32_3 : i32
    scf.if %10 {
      %c0 = arith.constant 0 : index
      %c0_4 = arith.constant 0 : index
      %11 = vector.load %arg9[%c0, %c0_4] : memref<256x128xf32, #tpu.memory_space<vmem>>, vector<256x128xf32>
      %12 = arith.truncf %11 : vector<256x128xf32> to vector<256x128xbf16>
      %c0_5 = arith.constant 0 : index
      %c0_6 = arith.constant 0 : index
      %13 = vector.load %arg6[%c0_5, %c0_6] : memref<128x128xbf16, #tpu.memory_space<vmem>>, vector<128x128xbf16>
      %cst = arith.constant dense<0.000000e+00> : vector<256x128xf32>
      %14 = tpu.matmul %12, %13, %cst {dimension_numbers = #tpu.dot_dimension_numbers<[1], [0], [0], [1], [0, 0, 1, 1], [], []>} : vector<256x128xbf16>, vector<128x128xbf16>, vector<256x128xf32> -> vector<256x128xf32>
      %c0_7 = arith.constant 0 : index
      %c0_8 = arith.constant 0 : index
      %15 = vector.load %arg7[%c0_7, %c0_8] : memref<1x128xf32, #tpu.memory_space<vmem>>, vector<1x128xf32>
      %16 = vector.broadcast %15 : vector<1x128xf32> to vector<256x128xf32>
      %17 = arith.addf %14, %16 : vector<256x128xf32>
      %cst_9 = arith.constant 0.000000e+00 : f32
      %18 = vector.broadcast %cst_9 : f32 to vector<256x128xf32>
      %19 = arith.maximumf %17, %18 : vector<256x128xf32>
      %20 = arith.truncf %19 : vector<256x128xf32> to vector<256x128xbf16>
      %c0_10 = arith.constant 0 : index
      %c0_11 = arith.constant 0 : index
      %21 = vector.load %arg8[%c0_10, %c0_11] : memref<256x128xbf16, #tpu.memory_space<vmem>>, vector<256x128xbf16>
      tpu.vector_store %arg8[%c0_10, %c0_11], %20 {strides = array<i32>} : memref<256x128xbf16, #tpu.memory_space<vmem>>, vector<256x128xbf16>,
    } else {
    }
    return
  }
  func.func @transform_0(%arg0: i32, %arg1: i32, %arg2: memref<1x1xi32, #tpu.memory_space<smem>>, %arg3: memref<1xi32, #tpu.memory_space<smem>>) -> (i32, i32) {
    %0 = arith.index_cast %arg0 : i32 to index
    %1 = arith.index_cast %arg1 : i32 to index
    %2 = memref.load %arg2[%0, %1] : memref<1x1xi32, #tpu.memory_space<smem>>
    %c0_i32 = arith.constant 0 : i32
    return %arg0, %2 : i32, i32
  }
  func.func @transform_1(%arg0: i32, %arg1: i32, %arg2: memref<1x1xi32, #tpu.memory_space<smem>>, %arg3: memref<1xi32, #tpu.memory_space<smem>>) -> (i32, i32) {
    %c0_i32 = arith.constant 0 : i32
    %c0_i32_0 = arith.constant 0 : i32
    %c0_i32_1 = arith.constant 0 : i32
    return %c0_i32, %c0_i32_0 : i32, i32
  }
  func.func @transform_2(%arg0: i32, %arg1: i32, %arg2: memref<1x1xi32, #tpu.memory_space<smem>>, %arg3: memref<1xi32, #tpu.memory_space<smem>>) -> (i32, i32) {
    %c0_i32 = arith.constant 0 : i32
    %c0_i32_0 = arith.constant 0 : i32
    %c0_i32_1 = arith.constant 0 : i32
    return %c0_i32, %c0_i32_0 : i32, i32
  }
  func.func @transform_3(%arg0: i32, %arg1: i32, %arg2: memref<1x1xi32, #tpu.memory_space<smem>>, %arg3: memref<1xi32, #tpu.memory_space<smem>>) -> (i32, i32) {
    %c0_i32 = arith.constant 0 : i32
    %c0_i32_0 = arith.constant 0 : i32
    %c0_i32_1 = arith.constant 0 : i32
    return %c0_i32, %c0_i32_0 : i32, i32
  }
  func.func @transform_4(%arg0: i32, %arg1: i32, %arg2: memref<1x1xi32, #tpu.memory_space<smem>>, %arg3: memref<1xi32, #tpu.memory_space<smem>>) -> (i32, i32) {
    %c0_i32 = arith.constant 0 : i32
    %c0_i32_0 = arith.constant 0 : i32
    return %arg0, %c0_i32 : i32, i32
  }
}

</mosaic_0001>

<llo_original>
// kernel: tpu_custom_call.1
$region0: #{tpu_custom_call.1}
  #allocation0 [shape = 'u32[]', space=smem, size = 0x4, offset = 0x4, fixed_abs, tag = 'smem constant byte address 0x4 - core index']
  #allocation1 [shape = 'u32[144,128]{1,0:T(1,128)}', space=vmem, size = 0x12000, scoped, tag = 'internal scratch']
  #allocation2 [shape = 'f32[256,128]{1,0:T(8,128)}', space=vmem, size = 0x20000, scoped, tag = 'scratch operand']
  #allocation3 [shape = 's32[1]{0}', space=sflag, size = 0x4, scoped, tag = 'scoped memory for tpu_custom_call.1']
  #allocation4 [shape = 's32[1,1]{1,0:T(1,128)S(6)}', space=smem, size = 0x200, scoped, tag = 'prefetched SMEM operand 0']
  #allocation5 [shape = 's32[1]{0:T(128)S(6)}', space=smem, size = 0x200, scoped, tag = 'prefetched SMEM operand 1']
  %s0 = inlined_call_operand.<no memory space> [shape: s32[1,1], index: 0, kind: input, shape index: {}]
  %s1 = inlined_call_operand.<no memory space> [shape: s32[1], index: 1, kind: input, shape index: {}]
  %s2 = inlined_call_operand.hbm [shape: bf16[256,256], index: 2, kind: input, shape index: {}]
  %s3 = inlined_call_operand.hbm [shape: bf16[256,128], index: 3, kind: input, shape index: {}]
  %s4 = inlined_call_operand.hbm [shape: bf16[128,128], index: 4, kind: input, shape index: {}]
  %s5 = inlined_call_operand.vmem [shape: f32[1,128], index: 5, kind: input, shape index: {}]
  %s6 = inlined_call_operand.hbm [shape: bf16[256,128], index: 6, kind: output, shape index: {}]
  %s7 = sld [smem:[#allocation0]]
  $region50: #{tpu_custom_call.1} parent=0
    _
  %s9 = ssub.s32 1, %s7
  %s10 = scalar_select 0, %s9, %s7
  %11 = sst [smem:[#allocation4]] %s0
  %12 = sst [smem:[#allocation5]] %s1
  $region1: #{tpu_custom_call.1} parent=0
    #allocation6 [shape = 'u8[131072]{0}', space=vmem, size = 0x20000, scoped, tag = 'input window, operand 2, single buffered']
    #allocation7 [shape = 's32[1]{0}', space=sflag, size = 0x4, scoped, tag = 'scoped memory for tpu_custom_call.1']
    #allocation8 [shape = 's32[1]{0}', space=sflag, size = 0x4, scoped, tag = 'scoped memory for tpu_custom_call.1']
    #allocation9 [shape = 'u8[65536]{0}', space=vmem, size = 0x10000, scoped, tag = 'input window, operand 3, single buffered']
    #allocation10 [shape = 's32[1]{0}', space=sflag, size = 0x4, scoped, tag = 'scoped memory for tpu_custom_call.1']
    #allocation11 [shape = 'u8[32768]{0}', space=vmem, size = 0x8000, scoped, tag = 'input window, operand 4, single buffered']
    #allocation12 [shape = 'u8[65536]{0}', space=vmem, size = 0x10000, scoped, tag = 'output window, operand 0, single buffered']
    %13 = vsyncpa [#allocation7], 0
    %14 = vsyncpa [#allocation10], 0
    %15 = vsyncpa [#allocation8], 0
    // Predicated region
    $region2: #{tpu_custom_call.1} parent=1 // pred_check
      _
    $region3: #{tpu_custom_call.1} parent=1 // pred_check_branch
      %17 = sbr.rel (0) target = $region5
    $region4: #{tpu_custom_call.1} parent=1 // pred_region
      %s18 = sadd.s32 0, 0
      %s19 = smul.u32 %s18, 128
      %s20 = sadd.s32 %s19, 0
      %s21 = sld [smem:[#allocation4 + %s20]]
      %s22 = smul.u32 2, %s21
      %s24 = ssub.s32 4096, 4096
      %25 = vsyncadd [#allocation7], %s24
      %s26 = smul.addr %s22, 64
      %s27 = scalar_lea.hbm %s2, %s26
      %s28 = sshll.u32 [#allocation6], 4
      %s29 = int_to_ptr.vmem [resolvable:$true] %s28
      %34 = dma.hbm_to_vmem [thread:$0]  %s27, 4096, %s29, [#allocation7], 128, 128, 8
    $region5: #{tpu_custom_call.1} parent=1 // pred_fallthru
      _
    // Predicated region
    $region6: #{tpu_custom_call.1} parent=1 // pred_check
      _
    $region7: #{tpu_custom_call.1} parent=1 // pred_check_branch
      %36 = sbr.rel (0) target = $region9
    $region8: #{tpu_custom_call.1} parent=1 // pred_region
      %s38 = ssub.s32 2048, 2048
      %39 = vsyncadd [#allocation10], %s38
      %s40 = sshll.u32 [#allocation9], 4
      %s41 = int_to_ptr.vmem [resolvable:$true] %s40
      %46 = dma.hbm_to_vmem [thread:$0]  %s3, 2048, %s41, [#allocation10], 64, 64, 4
    $region9: #{tpu_custom_call.1} parent=1 // pred_fallthru
      _
    // Predicated region
    $region10: #{tpu_custom_call.1} parent=1 // pred_check
      _
    $region11: #{tpu_custom_call.1} parent=1 // pred_check_branch
      %48 = sbr.rel (0) target = $region13
    $region12: #{tpu_custom_call.1} parent=1 // pred_region
      %s50 = ssub.s32 1024, 1024
      %51 = vsyncadd [#allocation10], %s50
      %s52 = sshll.u32 [#allocation11], 4
      %s53 = int_to_ptr.vmem [resolvable:$true] %s52
      %58 = dma.hbm_to_vmem [thread:$0]  %s4, 1024, %s53, [#allocation10], 64, 64, 4
    $region13: #{tpu_custom_call.1} parent=1 // pred_fallthru
      _
    // Predicated region
    $region14: #{tpu_custom_call.1} parent=1 // pred_check
      _
    $region15: #{tpu_custom_call.1} parent=1 // pred_check_branch
      %60 = sbr.rel (0) target = $region17
    $region16: #{tpu_custom_call.1} parent=1 // pred_region
      _
    $region17: #{tpu_custom_call.1} parent=1 // pred_fallthru
      _
    // Predicated region
    $region18: #{tpu_custom_call.1} parent=1 // pred_check
      _
    $region19: #{tpu_custom_call.1} parent=1 // pred_check_branch
      %62 = sbr.rel (0) target = $region21
    $region20: #{tpu_custom_call.1} parent=1 // pred_region
      %63 = dma.done [#allocation7], 4096
    $region21: #{tpu_custom_call.1} parent=1 // pred_fallthru
      _
    // Predicated region
    $region22: #{tpu_custom_call.1} parent=1 // pred_check
      _
    $region23: #{tpu_custom_call.1} parent=1 // pred_check_branch
      %65 = sbr.rel (0) target = $region25
    $region24: #{tpu_custom_call.1} parent=1 // pred_region
      %66 = dma.done [#allocation10], 2048
    $region25: #{tpu_custom_call.1} parent=1 // pred_fallthru
      _
    // Predicated region
    $region26: #{tpu_custom_call.1} parent=1 // pred_check
      _
    $region27: #{tpu_custom_call.1} parent=1 // pred_check_branch
      %68 = sbr.rel (0) target = $region29
    $region28: #{tpu_custom_call.1} parent=1 // pred_region
      %69 = dma.done [#allocation10], 1024
    $region29: #{tpu_custom_call.1} parent=1 // pred_fallthru
      _
    %s70 = sadd.s32 0, 0
    %s71 = smul.u32 %s70, 128
    %s72 = sadd.s32 %s71, 0
    %s73 = sld [smem:[#allocation4 + %s72]]
    %s74 = smul.u32 2, %s73
    %p76 = scmp.eq.s32.totalorder 0, 0
    // Predicated region
    $region30: #{tpu_custom_call.1} parent=1 // pred_check
      %p77 = pneg %p76
    $region31: #{tpu_custom_call.1} parent=1 // pred_check_branch
      %79 = sbr.rel (%p77) target = $region33
    $region32: #{tpu_custom_call.1} parent=1 // pred_region
      %80 = vst [vmem:[#allocation2] sm:$0xff] 0.0
      %81 = vst [vmem:[#allocation2 + $0x8] sm:$0xff] 0.0
      %82 = vst [vmem:[#allocation2 + $0x10] sm:$0xff] 0.0
      %83 = vst [vmem:[#allocation2 + $0x18] sm:$0xff] 0.0
      %84 = vst [vmem:[#allocation2 + $0x20] sm:$0xff] 0.0
      %85 = vst [vmem:[#allocation2 + $0x28] sm:$0xff] 0.0
      %86 = vst [vmem:[#allocation2 + $0x30] sm:$0xff] 0.0
      %87 = vst [vmem:[#allocation2 + $0x38] sm:$0xff] 0.0
      %88 = vst [vmem:[#allocation2 + $0x40] sm:$0xff] 0.0
      %89 = vst [vmem:[#allocation2 + $0x48] sm:$0xff] 0.0
      %90 = vst [vmem:[#allocation2 + $0x50] sm:$0xff] 0.0
      %91 = vst [vmem:[#allocation2 + $0x58] sm:$0xff] 0.0
      %92 = vst [vmem:[#allocation2 + $0x60] sm:$0xff] 0.0
      %93 = vst [vmem:[#allocation2 + $0x68] sm:$0xff] 0.0
      %94 = vst [vmem:[#allocation2 + $0x70] sm:$0xff] 0.0
      %95 = vst [vmem:[#allocation2 + $0x78] sm:$0xff] 0.0
      %96 = vst [vmem:[#allocation2 + $0x80] sm:$0xff] 0.0
      %97 = vst [vmem:[#allocation2 + $0x88] sm:$0xff] 0.0
      %98 = vst [vmem:[#allocation2 + $0x90] sm:$0xff] 0.0
      %99 = vst [vmem:[#allocation2 + $0x98] sm:$0xff] 0.0
      %100 = vst [vmem:[#allocation2 + $0xa0] sm:$0xff] 0.0
      %101 = vst [vmem:[#allocation2 + $0xa8] sm:$0xff] 0.0
      %102 = vst [vmem:[#allocation2 + $0xb0] sm:$0xff] 0.0
      %103 = vst [vmem:[#allocation2 + $0xb8] sm:$0xff] 0.0
      %104 = vst [vmem:[#allocation2 + $0xc0] sm:$0xff] 0.0
      %105 = vst [vmem:[#allocation2 + $0xc8] sm:$0xff] 0.0
      %106 = vst [vmem:[#allocation2 + $0xd0] sm:$0xff] 0.0
      %107 = vst [vmem:[#allocation2 + $0xd8] sm:$0xff] 0.0
      %108 = vst [vmem:[#allocation2 + $0xe0] sm:$0xff] 0.0
      %109 = vst [vmem:[#allocation2 + $0xe8] sm:$0xff] 0.0
      %110 = vst [vmem:[#allocation2 + $0xf0] sm:$0xff] 0.0
      %111 = vst [vmem:[#allocation2 + $0xf8] sm:$0xff] 0.0
    $region33: #{tpu_custom_call.1} parent=1 // pred_fallthru
      _
    %s112 = sld [smem:[#allocation5]]
    %p113 = scmp.lt.s32.totalorder 0, %s112
    // Predicated region
    $region34: #{tpu_custom_call.1} parent=1 // pred_check
      %p114 = pneg %p113
    $region35: #{tpu_custom_call.1} parent=1 // pred_check_branch
      %116 = sbr.rel (%p114) target = $region37
    $region36: #{tpu_custom_call.1} parent=1 // pred_region
      %s117 = sadd.s32 0, 0
      %s118 = smul.u32 %s117, 128
      %s119 = sadd.s32 %s118, 0
      %s120 = sld [smem:[#allocation4 + %s119]]
      %s121 = smul.u32 %s120, 256
      %s122 = sshra.s32 %s121, 3
      %s123 = sand.u32 %s121, 7
      %s124 = smul.addr %s122, 4
      %s125 = scalar_lea.vmem [#allocation9], %s124
      %v126 = vld [vmem:[%s125] sm:$0xf]
      %v127 = vld [vmem:[%s125 + $0x4] sm:$0xf]
      %v128 = vld [vmem:[%s125 + $0x8] sm:$0xf]
      %v129 = vld [vmem:[%s125 + $0xc] sm:$0xf]
      %v130 = vld [vmem:[%s125 + $0x10] sm:$0xf]
      %v131 = vld [vmem:[%s125 + $0x14] sm:$0xf]
      %v132 = vld [vmem:[%s125 + $0x18] sm:$0xf]
      %v133 = vld [vmem:[%s125 + $0x1c] sm:$0xf]
      %v134 = vld [vmem:[%s125 + $0x20] sm:$0xf]
      %v135 = vld [vmem:[%s125 + $0x24] sm:$0xf]
      %v136 = vld [vmem:[%s125 + $0x28] sm:$0xf]
      %v137 = vld [vmem:[%s125 + $0x2c] sm:$0xf]
      %v138 = vld [vmem:[%s125 + $0x30] sm:$0xf]
      %v139 = vld [vmem:[%s125 + $0x34] sm:$0xf]
      %v140 = vld [vmem:[%s125 + $0x38] sm:$0xf]
      %v141 = vld [vmem:[%s125 + $0x3c] sm:$0xf]
      %v142 = vld [vmem:[%s125 + $0x40] sm:$0xf]
      %v143 = vld [vmem:[%s125 + $0x44] sm:$0xf]
      %v144 = vld [vmem:[%s125 + $0x48] sm:$0xf]
      %v145 = vld [vmem:[%s125 + $0x4c] sm:$0xf]
      %v146 = vld [vmem:[%s125 + $0x50] sm:$0xf]
      %v147 = vld [vmem:[%s125 + $0x54] sm:$0xf]
      %v148 = vld [vmem:[%s125 + $0x58] sm:$0xf]
      %v149 = vld [vmem:[%s125 + $0x5c] sm:$0xf]
      %v150 = vld [vmem:[%s125 + $0x60] sm:$0xf]
      %v151 = vld [vmem:[%s125 + $0x64] sm:$0xf]
      %v152 = vld [vmem:[%s125 + $0x68] sm:$0xf]
      %v153 = vld [vmem:[%s125 + $0x6c] sm:$0xf]
      %v154 = vld [vmem:[%s125 + $0x70] sm:$0xf]
      %v155 = vld [vmem:[%s125 + $0x74] sm:$0xf]
      %v156 = vld [vmem:[%s125 + $0x78] sm:$0xf]
      %v157 = vld [vmem:[%s125 + $0x7c] sm:$0xf]
      %v158 = vld [vmem:[#allocation2] sm:$0xff]
      %v159 = vld [vmem:[#allocation2 + $0x8] sm:$0xff]
      %v160 = vld [vmem:[#allocation2 + $0x10] sm:$0xff]
      %v161 = vld [vmem:[#allocation2 + $0x18] sm:$0xff]
      %v162 = vld [vmem:[#allocation2 + $0x20] sm:$0xff]
      %v163 = vld [vmem:[#allocation2 + $0x28] sm:$0xff]
      %v164 = vld [vmem:[#allocation2 + $0x30] sm:$0xff]
      %v165 = vld [vmem:[#allocation2 + $0x38] sm:$0xff]
      %v166 = vld [vmem:[#allocation2 + $0x40] sm:$0xff]
      %v167 = vld [vmem:[#allocation2 + $0x48] sm:$0xff]
      %v168 = vld [vmem:[#allocation2 + $0x50] sm:$0xff]
      %v169 = vld [vmem:[#allocation2 + $0x58] sm:$0xff]
      %v170 = vld [vmem:[#allocation2 + $0x60] sm:$0xff]
      %v171 = vld [vmem:[#allocation2 + $0x68] sm:$0xff]
      %v172 = vld [vmem:[#allocation2 + $0x70] sm:$0xff]
      %v173 = vld [vmem:[#allocation2 + $0x78] sm:$0xff]
      %v174 = vld [vmem:[#allocation2 + $0x80] sm:$0xff]
      %v175 = vld [vmem:[#allocation2 + $0x88] sm:$0xff]
      %v176 = vld [vmem:[#allocation2 + $0x90] sm:$0xff]
      %v177 = vld [vmem:[#allocation2 + $0x98] sm:$0xff]
      %v178 = vld [vmem:[#allocation2 + $0xa0] sm:$0xff]
      %v179 = vld [vmem:[#allocation2 + $0xa8] sm:$0xff]
      %v180 = vld [vmem:[#allocation2 + $0xb0] sm:$0xff]
      %v181 = vld [vmem:[#allocation2 + $0xb8] sm:$0xff]
      %v182 = vld [vmem:[#allocation2 + $0xc0] sm:$0xff]
      %v183 = vld [vmem:[#allocation2 + $0xc8] sm:$0xff]
      %v184 = vld [vmem:[#allocation2 + $0xd0] sm:$0xff]
      %v185 = vld [vmem:[#allocation2 + $0xd8] sm:$0xff]
      %v186 = vld [vmem:[#allocation2 + $0xe0] sm:$0xff]
      %v187 = vld [vmem:[#allocation2 + $0xe8] sm:$0xff]
      %v188 = vld [vmem:[#allocation2 + $0xf0] sm:$0xff]
      %v189 = vld [vmem:[#allocation2 + $0xf8] sm:$0xff]
      %v190 = vld [vmem:[#allocation6] sm:$0xff]
      %v191 = vld [vmem:[#allocation6 + $0x8] sm:$0xff]
      %v192 = vld [vmem:[#allocation6 + $0x10] sm:$0xff]
      %v193 = vld [vmem:[#allocation6 + $0x18] sm:$0xff]
      %v194 = vld [vmem:[#allocation6 + $0x20] sm:$0xff]
      %v195 = vld [vmem:[#allocation6 + $0x28] sm:$0xff]
      %v196 = vld [vmem:[#allocation6 + $0x30] sm:$0xff]
      %v197 = vld [vmem:[#allocation6 + $0x38] sm:$0xff]
      %v198 = vld [vmem:[#allocation6 + $0x40] sm:$0xff]
      %v199 = vld [vmem:[#allocation6 + $0x48] sm:$0xff]
      %v200 = vld [vmem:[#allocation6 + $0x50] sm:$0xff]
      %v201 = vld [vmem:[#allocation6 + $0x58] sm:$0xff]
      %v202 = vld [vmem:[#allocation6 + $0x60] sm:$0xff]
      %v203 = vld [vmem:[#allocation6 + $0x68] sm:$0xff]
      %v204 = vld [vmem:[#allocation6 + $0x70] sm:$0xff]
      %v205 = vld [vmem:[#allocation6 + $0x78] sm:$0xff]
      %v206 = vld [vmem:[#allocation6 + $0x80] sm:$0xff]
      %v207 = vld [vmem:[#allocation6 + $0x88] sm:$0xff]
      %v208 = vld [vmem:[#allocation6 + $0x90] sm:$0xff]
      %v209 = vld [vmem:[#allocation6 + $0x98] sm:$0xff]
      %v210 = vld [vmem:[#allocation6 + $0xa0] sm:$0xff]
      %v211 = vld [vmem:[#allocation6 + $0xa8] sm:$0xff]
      %v212 = vld [vmem:[#allocation6 + $0xb0] sm:$0xff]
      %v213 = vld [vmem:[#allocation6 + $0xb8] sm:$0xff]
      %v214 = vld [vmem:[#allocation6 + $0xc0] sm:$0xff]
      %v215 = vld [vmem:[#allocation6 + $0xc8] sm:$0xff]
      %v216 = vld [vmem:[#allocation6 + $0xd0] sm:$0xff]
      %v217 = vld [vmem:[#allocation6 + $0xd8] sm:$0xff]
      %v218 = vld [vmem:[#allocation6 + $0xe0] sm:$0xff]
      %v219 = vld [vmem:[#allocation6 + $0xe8] sm:$0xff]
      %v220 = vld [vmem:[#allocation6 + $0xf0] sm:$0xff]
      %v221 = vld [vmem:[#allocation6 + $0xf8] sm:$0xff]
      %v254 = vunpack.c.l.b16 %v190
      %v255 = vunpack.c.h.b16 %v190
      %v256 = vunpack.c.l.b16 %v191
      %v257 = vunpack.c.h.b16 %v191
      %v258 = vunpack.c.l.b16 %v192
      %v259 = vunpack.c.h.b16 %v192
      %v260 = vunpack.c.l.b16 %v193
      %v261 = vunpack.c.h.b16 %v193
      %v262 = vunpack.c.l.b16 %v194
      %v263 = vunpack.c.h.b16 %v194
      %v264 = vunpack.c.l.b16 %v195
      %v265 = vunpack.c.h.b16 %v195
      %v266 = vunpack.c.l.b16 %v196
      %v267 = vunpack.c.h.b16 %v196
      %v268 = vunpack.c.l.b16 %v197
      %v269 = vunpack.c.h.b16 %v197
      %v270 = vunpack.c.l.b16 %v198
      %v271 = vunpack.c.h.b16 %v198
      %v272 = vunpack.c.l.b16 %v199
      %v273 = vunpack.c.h.b16 %v199
      %v274 = vunpack.c.l.b16 %v200
      %v275 = vunpack.c.h.b16 %v200
      %v276 = vunpack.c.l.b16 %v201
      %v277 = vunpack.c.h.b16 %v201
      %v278 = vunpack.c.l.b16 %v202
      %v279 = vunpack.c.h.b16 %v202
      %v280 = vunpack.c.l.b16 %v203
      %v281 = vunpack.c.h.b16 %v203
      %v282 = vunpack.c.l.b16 %v204
      %v283 = vunpack.c.h.b16 %v204
      %v284 = vunpack.c.l.b16 %v205
      %v285 = vunpack.c.h.b16 %v205
      %v286 = vunpack.c.l.b16 %v206
      %v287 = vunpack.c.h.b16 %v206
      %v288 = vunpack.c.l.b16 %v207
      %v289 = vunpack.c.h.b16 %v207
      %v290 = vunpack.c.l.b16 %v208
      %v291 = vunpack.c.h.b16 %v208
      %v292 = vunpack.c.l.b16 %v209
      %v293 = vunpack.c.h.b16 %v209
      %v294 = vunpack.c.l.b16 %v210
      %v295 = vunpack.c.h.b16 %v210
      %v296 = vunpack.c.l.b16 %v211
      %v297 = vunpack.c.h.b16 %v211
      %v298 = vunpack.c.l.b16 %v212
      %v299 = vunpack.c.h.b16 %v212
      %v300 = vunpack.c.l.b16 %v213
      %v301 = vunpack.c.h.b16 %v213
      %v302 = vunpack.c.l.b16 %v214
      %v303 = vunpack.c.h.b16 %v214
      %v304 = vunpack.c.l.b16 %v215
      %v305 = vunpack.c.h.b16 %v215
      %v306 = vunpack.c.l.b16 %v216
      %v307 = vunpack.c.h.b16 %v216
      %v308 = vunpack.c.l.b16 %v217
      %v309 = vunpack.c.h.b16 %v217
      %v310 = vunpack.c.l.b16 %v218
      %v311 = vunpack.c.h.b16 %v218
      %v312 = vunpack.c.l.b16 %v219
      %v313 = vunpack.c.h.b16 %v219
      %v314 = vunpack.c.l.b16 %v220
      %v315 = vunpack.c.h.b16 %v220
      %v316 = vunpack.c.l.b16 %v221
      %v317 = vunpack.c.h.b16 %v221
      %v318 = vpack.c.b16 %v256, %v254
      %v319 = vpack.c.b16 %v257, %v255
      %v320 = vpack.c.b16 %v260, %v258
      %v321 = vpack.c.b16 %v261, %v259
      %v322 = vpack.c.b16 %v264, %v262
      %v323 = vpack.c.b16 %v265, %v263
      %v324 = vpack.c.b16 %v268, %v266
      %v325 = vpack.c.b16 %v269, %v267
      %v326 = vpack.c.b16 %v272, %v270
      %v327 = vpack.c.b16 %v273, %v271
      %v328 = vpack.c.b16 %v276, %v274
      %v329 = vpack.c.b16 %v277, %v275
      %v330 = vpack.c.b16 %v280, %v278
      %v331 = vpack.c.b16 %v281, %v279
      %v332 = vpack.c.b16 %v284, %v282
      %v333 = vpack.c.b16 %v285, %v283
      %v334 = vpack.c.b16 %v288, %v286
      %v335 = vpack.c.b16 %v289, %v287
      %v336 = vpack.c.b16 %v292, %v290
      %v337 = vpack.c.b16 %v293, %v291
      %v338 = vpack.c.b16 %v296, %v294
      %v339 = vpack.c.b16 %v297, %v295
      %v340 = vpack.c.b16 %v300, %v298
      %v341 = vpack.c.b16 %v301, %v299
      %v342 = vpack.c.b16 %v304, %v302
      %v343 = vpack.c.b16 %v305, %v303
      %v344 = vpack.c.b16 %v308, %v306
      %v345 = vpack.c.b16 %v309, %v307
      %v346 = vpack.c.b16 %v312, %v310
      %v347 = vpack.c.b16 %v313, %v311
      %v348 = vpack.c.b16 %v316, %v314
      %v349 = vpack.c.b16 %v317, %v315
      %v414 = vunpack.c.l.b16 %v126
      %v415 = vunpack.c.l.b16 %v127
      %v416 = vunpack.c.l.b16 %v128
      %v417 = vunpack.c.l.b16 %v129
      %v418 = vunpack.c.l.b16 %v130
      %v419 = vunpack.c.l.b16 %v131
      %v420 = vunpack.c.l.b16 %v132
      %v421 = vunpack.c.l.b16 %v133
      %v422 = vunpack.c.l.b16 %v134
      %v423 = vunpack.c.l.b16 %v135
      %v424 = vunpack.c.l.b16 %v136
      %v425 = vunpack.c.l.b16 %v137
      %v426 = vunpack.c.l.b16 %v138
      %v427 = vunpack.c.l.b16 %v139
      %v428 = vunpack.c.l.b16 %v140
      %v429 = vunpack.c.l.b16 %v141
      %v430 = vunpack.c.l.b16 %v142
      %v431 = vunpack.c.l.b16 %v143
      %v432 = vunpack.c.l.b16 %v144
      %v433 = vunpack.c.l.b16 %v145
      %v434 = vunpack.c.l.b16 %v146
      %v435 = vunpack.c.l.b16 %v147
      %v436 = vunpack.c.l.b16 %v148
      %v437 = vunpack.c.l.b16 %v149
      %v438 = vunpack.c.l.b16 %v150
      %v439 = vunpack.c.l.b16 %v151
      %v440 = vunpack.c.l.b16 %v152
      %v441 = vunpack.c.l.b16 %v153
      %v442 = vunpack.c.l.b16 %v154
      %v443 = vunpack.c.l.b16 %v155
      %v444 = vunpack.c.l.b16 %v156
      %v445 = vunpack.c.l.b16 %v157
      %v446 = vpack.c.b16 %v415, %v414
      %v447 = vpack.c.b16 %v417, %v416
      %v448 = vpack.c.b16 %v419, %v418
      %v449 = vpack.c.b16 %v421, %v420
      %v450 = vpack.c.b16 %v423, %v422
      %v451 = vpack.c.b16 %v425, %v424
      %v452 = vpack.c.b16 %v427, %v426
      %v453 = vpack.c.b16 %v429, %v428
      %v454 = vpack.c.b16 %v431, %v430
      %v455 = vpack.c.b16 %v433, %v432
      %v456 = vpack.c.b16 %v435, %v434
      %v457 = vpack.c.b16 %v437, %v436
      %v458 = vpack.c.b16 %v439, %v438
      %v459 = vpack.c.b16 %v441, %v440
      %v460 = vpack.c.b16 %v443, %v442
      %v461 = vpack.c.b16 %v445, %v444
      %478 = vmatprep.subr.bf16.mxu0 0
      %479 = vmatpush1.bf16.msra.mxu0 %v446
      %480 = vmatprep.subr.bf16.mxu0 0
      %481 = vmatpush1.bf16.msra.mxu0 %v447
      %482 = vmatprep.subr.bf16.mxu0 0
      %483 = vmatpush1.bf16.msra.mxu0 %v448
      %484 = vmatprep.subr.bf16.mxu0 0
      %485 = vmatpush1.bf16.msra.mxu0 %v449
      %486 = vmatprep.subr.bf16.mxu0 0
      %487 = vmatpush1.bf16.msra.mxu0 %v450
      %488 = vmatprep.subr.bf16.mxu0 0
      %489 = vmatpush1.bf16.msra.mxu0 %v451
      %490 = vmatprep.subr.bf16.mxu0 0
      %491 = vmatpush1.bf16.msra.mxu0 %v452
      %492 = vmatprep.subr.bf16.mxu0 0
      %493 = vmatpush1.bf16.msra.mxu0 %v453
      %494 = vmatprep.subr.bf16.mxu0 0
      %495 = vmatpush1.bf16.msra.mxu0 %v454
      %496 = vmatprep.subr.bf16.mxu0 0
      %497 = vmatpush1.bf16.msra.mxu0 %v455
      %498 = vmatprep.subr.bf16.mxu0 0
      %499 = vmatpush1.bf16.msra.mxu0 %v456
      %500 = vmatprep.subr.bf16.mxu0 0
      %501 = vmatpush1.bf16.msra.mxu0 %v457
      %502 = vmatprep.subr.bf16.mxu0 0
      %503 = vmatpush1.bf16.msra.mxu0 %v458
      %504 = vmatprep.subr.bf16.mxu0 0
      %505 = vmatpush1.bf16.msra.mxu0 %v459
      %506 = vmatprep.subr.bf16.mxu0 0
      %507 = vmatpush1.bf16.msra.mxu0 %v460
      %508 = vmatprep.subr.bf16.mxu0 0
      %509 = vmatpush1.bf16.msra.mxu0 %v461
      %510 = vmatprep.mubr.bf16.mxu0 %v319
      %511 = vmatmul.mubr.bf16.gmra.mrb[0].mxu0 %v318
      %v512 = vpop.f32.mrb[0].mxu0
      %v513 = vadd.f32 0.0, %v512
      %v514 = vpop.f32.mrb[0].mxu0
      %v515 = vpop.f32.mrb[0].mxu0
      %v516 = vadd.f32 0.0, %v515
      %v517 = vpop.f32.mrb[0].mxu0
      %518 = vmatprep.mubr.bf16.mxu0 %v321
      %519 = vmatmul.mubr.bf16.gmra.mrb[0].mxu0 %v320
      %v520 = vpop.f32.mrb[0].mxu0
      %v521 = vadd.f32 0.0, %v520
      %v522 = vpop.f32.mrb[0].mxu0
      %v523 = vpop.f32.mrb[0].mxu0
      %v524 = vadd.f32 0.0, %v523
      %v525 = vpop.f32.mrb[0].mxu0
      %526 = vmatprep.mubr.bf16.mxu0 %v323
      %527 = vmatmul.mubr.bf16.gmra.mrb[0].mxu0 %v322
      %v528 = vpop.f32.mrb[0].mxu0
      %v529 = vadd.f32 0.0, %v528
      %v530 = vpop.f32.mrb[0].mxu0
      %v531 = vpop.f32.mrb[0].mxu0
      %v532 = vadd.f32 0.0, %v531
      %v533 = vpop.f32.mrb[0].mxu0
      %534 = vmatprep.mubr.bf16.mxu0 %v325
      %535 = vmatmul.mubr.bf16.gmra.mrb[0].mxu0 %v324
      %v536 = vpop.f32.mrb[0].mxu0
      %v537 = vadd.f32 0.0, %v536
      %v538 = vpop.f32.mrb[0].mxu0
      %v539 = vpop.f32.mrb[0].mxu0
      %v540 = vadd.f32 0.0, %v539
      %v541 = vpop.f32.mrb[0].mxu0
      %542 = vmatprep.mubr.bf16.mxu0 %v327
      %543 = vmatmul.mubr.bf16.gmra.mrb[0].mxu0 %v326
      %v544 = vpop.f32.mrb[0].mxu0
      %v545 = vadd.f32 0.0, %v544
      %v546 = vpop.f32.mrb[0].mxu0
      %v547 = vpop.f32.mrb[0].mxu0
      %v548 = vadd.f32 0.0, %v547
      %v549 = vpop.f32.mrb[0].mxu0
      %550 = vmatprep.mubr.bf16.mxu0 %v329
      %551 = vmatmul.mubr.bf16.gmra.mrb[0].mxu0 %v328
      %v552 = vpop.f32.mrb[0].mxu0
      %v553 = vadd.f32 0.0, %v552
      %v554 = vpop.f32.mrb[0].mxu0
      %v555 = vpop.f32.mrb[0].mxu0
      %v556 = vadd.f32 0.0, %v555
      %v557 = vpop.f32.mrb[0].mxu0
      %558 = vmatprep.mubr.bf16.mxu0 %v331
      %559 = vmatmul.mubr.bf16.gmra.mrb[0].mxu0 %v330
      %v560 = vpop.f32.mrb[0].mxu0
      %v561 = vadd.f32 0.0, %v560
      %v562 = vpop.f32.mrb[0].mxu0
      %v563 = vpop.f32.mrb[0].mxu0
      %v564 = vadd.f32 0.0, %v563
      %v565 = vpop.f32.mrb[0].mxu0
      %566 = vmatprep.mubr.bf16.mxu0 %v333
      %567 = vmatmul.mubr.bf16.gmra.mrb[0].mxu0 %v332
      %v568 = vpop.f32.mrb[0].mxu0
      %v569 = vadd.f32 0.0, %v568
      %v570 = vpop.f32.mrb[0].mxu0
      %v571 = vpop.f32.mrb[0].mxu0
      %v572 = vadd.f32 0.0, %v571
      %v573 = vpop.f32.mrb[0].mxu0
      %574 = vmatprep.mubr.bf16.mxu0 %v335
      %575 = vmatmul.mubr.bf16.gmra.mrb[0].mxu0 %v334
      %v576 = vpop.f32.mrb[0].mxu0
      %v577 = vadd.f32 0.0, %v576
      %v578 = vpop.f32.mrb[0].mxu0
      %v579 = vpop.f32.mrb[0].mxu0
      %v580 = vadd.f32 0.0, %v579
      %v581 = vpop.f32.mrb[0].mxu0
      %582 = vmatprep.mubr.bf16.mxu0 %v337
      %583 = vmatmul.mubr.bf16.gmra.mrb[0].mxu0 %v336
      %v584 = vpop.f32.mrb[0].mxu0
      %v585 = vadd.f32 0.0, %v584
      %v586 = vpop.f32.mrb[0].mxu0
      %v587 = vpop.f32.mrb[0].mxu0
      %v588 = vadd.f32 0.0, %v587
      %v589 = vpop.f32.mrb[0].mxu0
      %590 = vmatprep.mubr.bf16.mxu0 %v339
      %591 = vmatmul.mubr.bf16.gmra.mrb[0].mxu0 %v338
      %v592 = vpop.f32.mrb[0].mxu0
      %v593 = vadd.f32 0.0, %v592
      %v594 = vpop.f32.mrb[0].mxu0
      %v595 = vpop.f32.mrb[0].mxu0
      %v596 = vadd.f32 0.0, %v595
      %v597 = vpop.f32.mrb[0].mxu0
      %598 = vmatprep.mubr.bf16.mxu0 %v341
      %599 = vmatmul.mubr.bf16.gmra.mrb[0].mxu0 %v340
      %v600 = vpop.f32.mrb[0].mxu0
      %v601 = vadd.f32 0.0, %v600
      %v602 = vpop.f32.mrb[0].mxu0
      %v603 = vpop.f32.mrb[0].mxu0
      %v604 = vadd.f32 0.0, %v603
      %v605 = vpop.f32.mrb[0].mxu0
      %606 = vmatprep.mubr.bf16.mxu0 %v343
      %607 = vmatmul.mubr.bf16.gmra.mrb[0].mxu0 %v342
      %v608 = vpop.f32.mrb[0].mxu0
      %v609 = vadd.f32 0.0, %v608
      %v610 = vpop.f32.mrb[0].mxu0
      %v611 = vpop.f32.mrb[0].mxu0
      %v612 = vadd.f32 0.0, %v611
      %v613 = vpop.f32.mrb[0].mxu0
      %614 = vmatprep.mubr.bf16.mxu0 %v345
      %615 = vmatmul.mubr.bf16.gmra.mrb[0].mxu0 %v344
      %v616 = vpop.f32.mrb[0].mxu0
      %v617 = vadd.f32 0.0, %v616
      %v618 = vpop.f32.mrb[0].mxu0
      %v619 = vpop.f32.mrb[0].mxu0
      %v620 = vadd.f32 0.0, %v619
      %v621 = vpop.f32.mrb[0].mxu0
      %622 = vmatprep.mubr.bf16.mxu0 %v347
      %623 = vmatmul.mubr.bf16.gmra.mrb[0].mxu0 %v346
      %v624 = vpop.f32.mrb[0].mxu0
      %v625 = vadd.f32 0.0, %v624
      %v626 = vpop.f32.mrb[0].mxu0
      %v627 = vpop.f32.mrb[0].mxu0
      %v628 = vadd.f32 0.0, %v627
      %v629 = vpop.f32.mrb[0].mxu0
      %630 = vmatprep.mubr.bf16.mxu0 %v349
      %631 = vmatmul.mubr.bf16.gmra.mrb[0].mxu0 %v348
      %v632 = vpop.f32.mrb[0].mxu0
      %v633 = vadd.f32 0.0, %v632
      %v634 = vpop.f32.mrb[0].mxu0
      %v635 = vpop.f32.mrb[0].mxu0
      %v636 = vadd.f32 0.0, %v635
      %v637 = vpop.f32.mrb[0].mxu0
      %638 = vdwg.mxu0
      %v639 = vadd.f32 %v158, %v513
      %v640 = vadd.f32 %v159, %v516
      %v641 = vadd.f32 %v160, %v521
      %v642 = vadd.f32 %v161, %v524
      %v643 = vadd.f32 %v162, %v529
      %v644 = vadd.f32 %v163, %v532
      %v645 = vadd.f32 %v164, %v537
      %v646 = vadd.f32 %v165, %v540
      %v647 = vadd.f32 %v166, %v545
      %v648 = vadd.f32 %v167, %v548
      %v649 = vadd.f32 %v168, %v553
      %v650 = vadd.f32 %v169, %v556
      %v651 = vadd.f32 %v170, %v561
      %v652 = vadd.f32 %v171, %v564
      %v653 = vadd.f32 %v172, %v569
      %v654 = vadd.f32 %v173, %v572
      %v655 = vadd.f32 %v174, %v577
      %v656 = vadd.f32 %v175, %v580
      %v657 = vadd.f32 %v176, %v585
      %v658 = vadd.f32 %v177, %v588
      %v659 = vadd.f32 %v178, %v593
      %v660 = vadd.f32 %v179, %v596
      %v661 = vadd.f32 %v180, %v601
      %v662 = vadd.f32 %v181, %v604
      %v663 = vadd.f32 %v182, %v609
      %v664 = vadd.f32 %v183, %v612
      %v665 = vadd.f32 %v184, %v617
      %v666 = vadd.f32 %v185, %v620
      %v667 = vadd.f32 %v186, %v625
      %v668 = vadd.f32 %v187, %v628
      %v669 = vadd.f32 %v188, %v633
      %v670 = vadd.f32 %v189, %v636
      %671 = vst [vmem:[#allocation2] sm:$0xff] %v639
      %672 = vst [vmem:[#allocation2 + $0x8] sm:$0xff] %v640
      %673 = vst [vmem:[#allocation2 + $0x10] sm:$0xff] %v641
      %674 = vst [vmem:[#allocation2 + $0x18] sm:$0xff] %v642
      %675 = vst [vmem:[#allocation2 + $0x20] sm:$0xff] %v643
      %676 = vst [vmem:[#allocation2 + $0x28] sm:$0xff] %v644
      %677 = vst [vmem:[#allocation2 + $0x30] sm:$0xff] %v645
      %678 = vst [vmem:[#allocation2 + $0x38] sm:$0xff] %v646
      %679 = vst [vmem:[#allocation2 + $0x40] sm:$0xff] %v647
      %680 = vst [vmem:[#allocation2 + $0x48] sm:$0xff] %v648
      %681 = vst [vmem:[#allocation2 + $0x50] sm:$0xff] %v649
      %682 = vst [vmem:[#allocation2 + $0x58] sm:$0xff] %v650
      %683 = vst [vmem:[#allocation2 + $0x60] sm:$0xff] %v651
      %684 = vst [vmem:[#allocation2 + $0x68] sm:$0xff] %v652
      %685 = vst [vmem:[#allocation2 + $0x70] sm:$0xff] %v653
      %686 = vst [vmem:[#allocation2 + $0x78] sm:$0xff] %v654
      %687 = vst [vmem:[#allocation2 + $0x80] sm:$0xff] %v655
      %688 = vst [vmem:[#allocation2 + $0x88] sm:$0xff] %v656
      %689 = vst [vmem:[#allocation2 + $0x90] sm:$0xff] %v657
      %690 = vst [vmem:[#allocation2 + $0x98] sm:$0xff] %v658
      %691 = vst [vmem:[#allocation2 + $0xa0] sm:$0xff] %v659
      %692 = vst [vmem:[#allocation2 + $0xa8] sm:$0xff] %v660
      %693 = vst [vmem:[#allocation2 + $0xb0] sm:$0xff] %v661
      %694 = vst [vmem:[#allocation2 + $0xb8] sm:$0xff] %v662
      %695 = vst [vmem:[#allocation2 + $0xc0] sm:$0xff] %v663
      %696 = vst [vmem:[#allocation2 + $0xc8] sm:$0xff] %v664
      %697 = vst [vmem:[#allocation2 + $0xd0] sm:$0xff] %v665
      %698 = vst [vmem:[#allocation2 + $0xd8] sm:$0xff] %v666
      %699 = vst [vmem:[#allocation2 + $0xe0] sm:$0xff] %v667
      %700 = vst [vmem:[#allocation2 + $0xe8] sm:$0xff] %v668
      %701 = vst [vmem:[#allocation2 + $0xf0] sm:$0xff] %v669
      %702 = vst [vmem:[#allocation2 + $0xf8] sm:$0xff] %v670
    $region37: #{tpu_custom_call.1} parent=1 // pred_fallthru
      _
    // Predicated region
    $region38: #{tpu_custom_call.1} parent=1 // pred_check
      %p703 = pneg %p76
    $region39: #{tpu_custom_call.1} parent=1 // pred_check_branch
      %705 = sbr.rel (%p703) target = $region41
    $region40: #{tpu_custom_call.1} parent=1 // pred_region
      %v706 = vld [vmem:[#allocation2] sm:$0xff]
      %v707 = vld [vmem:[#allocation2 + $0x8] sm:$0xff]
      %v708 = vld [vmem:[#allocation2 + $0x10] sm:$0xff]
      %v709 = vld [vmem:[#allocation2 + $0x18] sm:$0xff]
      %v710 = vld [vmem:[#allocation2 + $0x20] sm:$0xff]
      %v711 = vld [vmem:[#allocation2 + $0x28] sm:$0xff]
      %v712 = vld [vmem:[#allocation2 + $0x30] sm:$0xff]
      %v713 = vld [vmem:[#allocation2 + $0x38] sm:$0xff]
      %v714 = vld [vmem:[#allocation2 + $0x40] sm:$0xff]
      %v715 = vld [vmem:[#allocation2 + $0x48] sm:$0xff]
      %v716 = vld [vmem:[#allocation2 + $0x50] sm:$0xff]
      %v717 = vld [vmem:[#allocation2 + $0x58] sm:$0xff]
      %v718 = vld [vmem:[#allocation2 + $0x60] sm:$0xff]
      %v719 = vld [vmem:[#allocation2 + $0x68] sm:$0xff]
      %v720 = vld [vmem:[#allocation2 + $0x70] sm:$0xff]
      %v721 = vld [vmem:[#allocation2 + $0x78] sm:$0xff]
      %v722 = vld [vmem:[#allocation2 + $0x80] sm:$0xff]
      %v723 = vld [vmem:[#allocation2 + $0x88] sm:$0xff]
      %v724 = vld [vmem:[#allocation2 + $0x90] sm:$0xff]
      %v725 = vld [vmem:[#allocation2 + $0x98] sm:$0xff]
      %v726 = vld [vmem:[#allocation2 + $0xa0] sm:$0xff]
      %v727 = vld [vmem:[#allocation2 + $0xa8] sm:$0xff]
      %v728 = vld [vmem:[#allocation2 + $0xb0] sm:$0xff]
      %v729 = vld [vmem:[#allocation2 + $0xb8] sm:$0xff]
      %v730 = vld [vmem:[#allocation2 + $0xc0] sm:$0xff]
      %v731 = vld [vmem:[#allocation2 + $0xc8] sm:$0xff]
      %v732 = vld [vmem:[#allocation2 + $0xd0] sm:$0xff]
      %v733 = vld [vmem:[#allocation2 + $0xd8] sm:$0xff]
      %v734 = vld [vmem:[#allocation2 + $0xe0] sm:$0xff]
      %v735 = vld [vmem:[#allocation2 + $0xe8] sm:$0xff]
      %v736 = vld [vmem:[#allocation2 + $0xf0] sm:$0xff]
      %v737 = vld [vmem:[#allocation2 + $0xf8] sm:$0xff]
      %v738 = vpack.c.bf16 %v707, %v706
      %v739 = vpack.c.bf16 %v709, %v708
      %v740 = vpack.c.bf16 %v711, %v710
      %v741 = vpack.c.bf16 %v713, %v712
      %v742 = vpack.c.bf16 %v715, %v714
      %v743 = vpack.c.bf16 %v717, %v716
      %v744 = vpack.c.bf16 %v719, %v718
      %v745 = vpack.c.bf16 %v721, %v720
      %v746 = vpack.c.bf16 %v723, %v722
      %v747 = vpack.c.bf16 %v725, %v724
      %v748 = vpack.c.bf16 %v727, %v726
      %v749 = vpack.c.bf16 %v729, %v728
      %v750 = vpack.c.bf16 %v731, %v730
      %v751 = vpack.c.bf16 %v733, %v732
      %v752 = vpack.c.bf16 %v735, %v734
      %v753 = vpack.c.bf16 %v737, %v736
      %v754 = vld [vmem:[#allocation11] sm:$0xf]
      %v755 = vld [vmem:[#allocation11 + $0x4] sm:$0xf]
      %v756 = vld [vmem:[#allocation11 + $0x8] sm:$0xf]
      %v757 = vld [vmem:[#allocation11 + $0xc] sm:$0xf]
      %v758 = vld [vmem:[#allocation11 + $0x10] sm:$0xf]
      %v759 = vld [vmem:[#allocation11 + $0x14] sm:$0xf]
      %v760 = vld [vmem:[#allocation11 + $0x18] sm:$0xf]
      %v761 = vld [vmem:[#allocation11 + $0x1c] sm:$0xf]
      %v762 = vld [vmem:[#allocation11 + $0x20] sm:$0xf]
      %v763 = vld [vmem:[#allocation11 + $0x24] sm:$0xf]
      %v764 = vld [vmem:[#allocation11 + $0x28] sm:$0xf]
      %v765 = vld [vmem:[#allocation11 + $0x2c] sm:$0xf]
      %v766 = vld [vmem:[#allocation11 + $0x30] sm:$0xf]
      %v767 = vld [vmem:[#allocation11 + $0x34] sm:$0xf]
      %v768 = vld [vmem:[#allocation11 + $0x38] sm:$0xf]
      %v769 = vld [vmem:[#allocation11 + $0x3c] sm:$0xf]
      %v770 = vld [vmem:[%s5] sm:$0x1]
      %v772 = vlaneseq
      %v773 = vshrl.u32 %v772, 7
      %v774 = vsub.s32 0, %v773
      %v775 = vrot.slane %v770, %v774
      %v793 = vunpack.c.l.b16 %v754
      %v794 = vunpack.c.l.b16 %v755
      %v795 = vunpack.c.l.b16 %v756
      %v796 = vunpack.c.l.b16 %v757
      %v797 = vunpack.c.l.b16 %v758
      %v798 = vunpack.c.l.b16 %v759
      %v799 = vunpack.c.l.b16 %v760
      %v800 = vunpack.c.l.b16 %v761
      %v801 = vunpack.c.l.b16 %v762
      %v802 = vunpack.c.l.b16 %v763
      %v803 = vunpack.c.l.b16 %v764
      %v804 = vunpack.c.l.b16 %v765
      %v805 = vunpack.c.l.b16 %v766
      %v806 = vunpack.c.l.b16 %v767
      %v807 = vunpack.c.l.b16 %v768
      %v808 = vunpack.c.l.b16 %v769
      %v809 = vpack.c.b16 %v794, %v793
      %v810 = vpack.c.b16 %v796, %v795
      %v811 = vpack.c.b16 %v798, %v797
      %v812 = vpack.c.b16 %v800, %v799
      %v813 = vpack.c.b16 %v802, %v801
      %v814 = vpack.c.b16 %v804, %v803
      %v815 = vpack.c.b16 %v806, %v805
      %v816 = vpack.c.b16 %v808, %v807
      %825 = vmatprep.subr.bf16.mxu0 0
      %826 = vmatpush1.bf16.msra.mxu0 %v809
      %827 = vmatprep.subr.bf16.mxu0 0
      %828 = vmatpush1.bf16.msra.mxu0 %v810
      %829 = vmatprep.subr.bf16.mxu0 0
      %830 = vmatpush1.bf16.msra.mxu0 %v811
      %831 = vmatprep.subr.bf16.mxu0 0
      %832 = vmatpush1.bf16.msra.mxu0 %v812
      %833 = vmatprep.subr.bf16.mxu0 0
      %834 = vmatpush1.bf16.msra.mxu0 %v813
      %835 = vmatprep.subr.bf16.mxu0 0
      %836 = vmatpush1.bf16.msra.mxu0 %v814
      %837 = vmatprep.subr.bf16.mxu0 0
      %838 = vmatpush1.bf16.msra.mxu0 %v815
      %839 = vmatprep.subr.bf16.mxu0 0
      %840 = vmatpush1.bf16.msra.mxu0 %v816
      %841 = vmatprep.subr.bf16.mxu0 0
      %842 = vmatpush1.bf16.msra.mxu0 0
      %843 = vmatprep.subr.bf16.mxu0 0
      %844 = vmatpush1.bf16.msra.mxu0 0
      %845 = vmatprep.subr.bf16.mxu0 0
      %846 = vmatpush1.bf16.msra.mxu0 0
      %847 = vmatprep.subr.bf16.mxu0 0
      %848 = vmatpush1.bf16.msra.mxu0 0
      %849 = vmatprep.subr.bf16.mxu0 0
      %850 = vmatpush1.bf16.msra.mxu0 0
      %851 = vmatprep.subr.bf16.mxu0 0
      %852 = vmatpush1.bf16.msra.mxu0 0
      %853 = vmatprep.subr.bf16.mxu0 0
      %854 = vmatpush1.bf16.msra.mxu0 0
      %855 = vmatprep.subr.bf16.mxu0 0
      %856 = vmatpush1.bf16.msra.mxu0 0
      %857 = vmatprep.mubr.bf16.mxu0 0
      %858 = vmatmul.mubr.bf16.gmra.mrb[0].mxu0 %v738
      %v859 = vpop.f32.mrb[0].mxu0
      %v860 = vadd.f32 %v775, %v859
      %v861 = vpop.f32.mrb[0].mxu0
      %v862 = vpop.f32.mrb[0].mxu0
      %v863 = vadd.f32 %v775, %v862
      %v864 = vpop.f32.mrb[0].mxu0
      %865 = vmatprep.mubr.bf16.mxu0 0
      %866 = vmatmul.mubr.bf16.gmra.mrb[0].mxu0 %v739
      %v867 = vpop.f32.mrb[0].mxu0
      %v868 = vadd.f32 %v775, %v867
      %v869 = vpop.f32.mrb[0].mxu0
      %v870 = vpop.f32.mrb[0].mxu0
      %v871 = vadd.f32 %v775, %v870
      %v872 = vpop.f32.mrb[0].mxu0
      %873 = vmatprep.mubr.bf16.mxu0 0
      %874 = vmatmul.mubr.bf16.gmra.mrb[0].mxu0 %v740
      %v875 = vpop.f32.mrb[0].mxu0
      %v876 = vadd.f32 %v775, %v875
      %v877 = vpop.f32.mrb[0].mxu0
      %v878 = vpop.f32.mrb[0].mxu0
      %v879 = vadd.f32 %v775, %v878
      %v880 = vpop.f32.mrb[0].mxu0
      %881 = vmatprep.mubr.bf16.mxu0 0
      %882 = vmatmul.mubr.bf16.gmra.mrb[0].mxu0 %v741
      %v883 = vpop.f32.mrb[0].mxu0
      %v884 = vadd.f32 %v775, %v883
      %v885 = vpop.f32.mrb[0].mxu0
      %v886 = vpop.f32.mrb[0].mxu0
      %v887 = vadd.f32 %v775, %v886
      %v888 = vpop.f32.mrb[0].mxu0
      %889 = vmatprep.mubr.bf16.mxu0 0
      %890 = vmatmul.mubr.bf16.gmra.mrb[0].mxu0 %v742
      %v891 = vpop.f32.mrb[0].mxu0
      %v892 = vadd.f32 %v775, %v891
      %v893 = vpop.f32.mrb[0].mxu0
      %v894 = vpop.f32.mrb[0].mxu0
      %v895 = vadd.f32 %v775, %v894
      %v896 = vpop.f32.mrb[0].mxu0
      %897 = vmatprep.mubr.bf16.mxu0 0
      %898 = vmatmul.mubr.bf16.gmra.mrb[0].mxu0 %v743
      %v899 = vpop.f32.mrb[0].mxu0
      %v900 = vadd.f32 %v775, %v899
      %v901 = vpop.f32.mrb[0].mxu0
      %v902 = vpop.f32.mrb[0].mxu0
      %v903 = vadd.f32 %v775, %v902
      %v904 = vpop.f32.mrb[0].mxu0
      %905 = vmatprep.mubr.bf16.mxu0 0
      %906 = vmatmul.mubr.bf16.gmra.mrb[0].mxu0 %v744
      %v907 = vpop.f32.mrb[0].mxu0
      %v908 = vadd.f32 %v775, %v907
      %v909 = vpop.f32.mrb[0].mxu0
      %v910 = vpop.f32.mrb[0].mxu0
      %v911 = vadd.f32 %v775, %v910
      %v912 = vpop.f32.mrb[0].mxu0
      %913 = vmatprep.mubr.bf16.mxu0 0
      %914 = vmatmul.mubr.bf16.gmra.mrb[0].mxu0 %v745
      %v915 = vpop.f32.mrb[0].mxu0
      %v916 = vadd.f32 %v775, %v915
      %v917 = vpop.f32.mrb[0].mxu0
      %v918 = vpop.f32.mrb[0].mxu0
      %v919 = vadd.f32 %v775, %v918
      %v920 = vpop.f32.mrb[0].mxu0
      %921 = vmatprep.mubr.bf16.mxu0 0
      %922 = vmatmul.mubr.bf16.gmra.mrb[0].mxu0 %v746
      %v923 = vpop.f32.mrb[0].mxu0
      %v924 = vadd.f32 %v775, %v923
      %v925 = vpop.f32.mrb[0].mxu0
      %v926 = vpop.f32.mrb[0].mxu0
      %v927 = vadd.f32 %v775, %v926
      %v928 = vpop.f32.mrb[0].mxu0
      %929 = vmatprep.mubr.bf16.mxu0 0
      %930 = vmatmul.mubr.bf16.gmra.mrb[0].mxu0 %v747
      %v931 = vpop.f32.mrb[0].mxu0
      %v932 = vadd.f32 %v775, %v931
      %v933 = vpop.f32.mrb[0].mxu0
      %v934 = vpop.f32.mrb[0].mxu0
      %v935 = vadd.f32 %v775, %v934
      %v936 = vpop.f32.mrb[0].mxu0
      %937 = vmatprep.mubr.bf16.mxu0 0
      %938 = vmatmul.mubr.bf16.gmra.mrb[0].mxu0 %v748
      %v939 = vpop.f32.mrb[0].mxu0
      %v940 = vadd.f32 %v775, %v939
      %v941 = vpop.f32.mrb[0].mxu0
      %v942 = vpop.f32.mrb[0].mxu0
      %v943 = vadd.f32 %v775, %v942
      %v944 = vpop.f32.mrb[0].mxu0
      %945 = vmatprep.mubr.bf16.mxu0 0
      %946 = vmatmul.mubr.bf16.gmra.mrb[0].mxu0 %v749
      %v947 = vpop.f32.mrb[0].mxu0
      %v948 = vadd.f32 %v775, %v947
      %v949 = vpop.f32.mrb[0].mxu0
      %v950 = vpop.f32.mrb[0].mxu0
      %v951 = vadd.f32 %v775, %v950
      %v952 = vpop.f32.mrb[0].mxu0
      %953 = vmatprep.mubr.bf16.mxu0 0
      %954 = vmatmul.mubr.bf16.gmra.mrb[0].mxu0 %v750
      %v955 = vpop.f32.mrb[0].mxu0
      %v956 = vadd.f32 %v775, %v955
      %v957 = vpop.f32.mrb[0].mxu0
      %v958 = vpop.f32.mrb[0].mxu0
      %v959 = vadd.f32 %v775, %v958
      %v960 = vpop.f32.mrb[0].mxu0
      %961 = vmatprep.mubr.bf16.mxu0 0
      %962 = vmatmul.mubr.bf16.gmra.mrb[0].mxu0 %v751
      %v963 = vpop.f32.mrb[0].mxu0
      %v964 = vadd.f32 %v775, %v963
      %v965 = vpop.f32.mrb[0].mxu0
      %v966 = vpop.f32.mrb[0].mxu0
      %v967 = vadd.f32 %v775, %v966
      %v968 = vpop.f32.mrb[0].mxu0
      %969 = vmatprep.mubr.bf16.mxu0 0
      %970 = vmatmul.mubr.bf16.gmra.mrb[0].mxu0 %v752
      %v971 = vpop.f32.mrb[0].mxu0
      %v972 = vadd.f32 %v775, %v971
      %v973 = vpop.f32.mrb[0].mxu0
      %v974 = vpop.f32.mrb[0].mxu0
      %v975 = vadd.f32 %v775, %v974
      %v976 = vpop.f32.mrb[0].mxu0
      %977 = vmatprep.mubr.bf16.mxu0 0
      %978 = vmatmul.mubr.bf16.gmra.mrb[0].mxu0 %v753
      %v979 = vpop.f32.mrb[0].mxu0
      %v980 = vadd.f32 %v775, %v979
      %v981 = vpop.f32.mrb[0].mxu0
      %v982 = vpop.f32.mrb[0].mxu0
      %v983 = vadd.f32 %v775, %v982
      %v984 = vpop.f32.mrb[0].mxu0
      %985 = vdwg.mxu0
      %v986 = vmax.f32 %v860, 0.0
      %v987 = vmax.f32 %v863, 0.0
      %v988 = vmax.f32 %v868, 0.0
      %v989 = vmax.f32 %v871, 0.0
      %v990 = vmax.f32 %v876, 0.0
      %v991 = vmax.f32 %v879, 0.0
      %v992 = vmax.f32 %v884, 0.0
      %v993 = vmax.f32 %v887, 0.0
      %v994 = vmax.f32 %v892, 0.0
      %v995 = vmax.f32 %v895, 0.0
      %v996 = vmax.f32 %v900, 0.0
      %v997 = vmax.f32 %v903, 0.0
      %v998 = vmax.f32 %v908, 0.0
      %v999 = vmax.f32 %v911, 0.0
      %v1000 = vmax.f32 %v916, 0.0
      %v1001 = vmax.f32 %v919, 0.0
      %v1002 = vmax.f32 %v924, 0.0
      %v1003 = vmax.f32 %v927, 0.0
      %v1004 = vmax.f32 %v932, 0.0
      %v1005 = vmax.f32 %v935, 0.0
      %v1006 = vmax.f32 %v940, 0.0
      %v1007 = vmax.f32 %v943, 0.0
      %v1008 = vmax.f32 %v948, 0.0
      %v1009 = vmax.f32 %v951, 0.0
      %v1010 = vmax.f32 %v956, 0.0
      %v1011 = vmax.f32 %v959, 0.0
      %v1012 = vmax.f32 %v964, 0.0
      %v1013 = vmax.f32 %v967, 0.0
      %v1014 = vmax.f32 %v972, 0.0
      %v1015 = vmax.f32 %v975, 0.0
      %v1016 = vmax.f32 %v980, 0.0
      %v1017 = vmax.f32 %v983, 0.0
      %v1018 = vpack.c.bf16 %v987, %v986
      %v1019 = vpack.c.bf16 %v989, %v988
      %v1020 = vpack.c.bf16 %v991, %v990
      %v1021 = vpack.c.bf16 %v993, %v992
      %v1022 = vpack.c.bf16 %v995, %v994
      %v1023 = vpack.c.bf16 %v997, %v996
      %v1024 = vpack.c.bf16 %v999, %v998
      %v1025 = vpack.c.bf16 %v1001, %v1000
      %v1026 = vpack.c.bf16 %v1003, %v1002
      %v1027 = vpack.c.bf16 %v1005, %v1004
      %v1028 = vpack.c.bf16 %v1007, %v1006
      %v1029 = vpack.c.bf16 %v1009, %v1008
      %v1030 = vpack.c.bf16 %v1011, %v1010
      %v1031 = vpack.c.bf16 %v1013, %v1012
      %v1032 = vpack.c.bf16 %v1015, %v1014
      %v1033 = vpack.c.bf16 %v1017, %v1016
      %v1050 = vunpack.c.l.b16 %v1018
      %v1051 = vunpack.c.h.b16 %v1018
      %v1052 = vunpack.c.l.b16 %v1019
      %v1053 = vunpack.c.h.b16 %v1019
      %v1054 = vunpack.c.l.b16 %v1020
      %v1055 = vunpack.c.h.b16 %v1020
      %v1056 = vunpack.c.l.b16 %v1021
      %v1057 = vunpack.c.h.b16 %v1021
      %v1058 = vunpack.c.l.b16 %v1022
      %v1059 = vunpack.c.h.b16 %v1022
      %v1060 = vunpack.c.l.b16 %v1023
      %v1061 = vunpack.c.h.b16 %v1023
      %v1062 = vunpack.c.l.b16 %v1024
      %v1063 = vunpack.c.h.b16 %v1024
      %v1064 = vunpack.c.l.b16 %v1025
      %v1065 = vunpack.c.h.b16 %v1025
      %v1066 = vunpack.c.l.b16 %v1026
      %v1067 = vunpack.c.h.b16 %v1026
      %v1068 = vunpack.c.l.b16 %v1027
      %v1069 = vunpack.c.h.b16 %v1027
      %v1070 = vunpack.c.l.b16 %v1028
      %v1071 = vunpack.c.h.b16 %v1028
      %v1072 = vunpack.c.l.b16 %v1029
      %v1073 = vunpack.c.h.b16 %v1029
      %v1074 = vunpack.c.l.b16 %v1030
      %v1075 = vunpack.c.h.b16 %v1030
      %v1076 = vunpack.c.l.b16 %v1031
      %v1077 = vunpack.c.h.b16 %v1031
      %v1078 = vunpack.c.l.b16 %v1032
      %v1079 = vunpack.c.h.b16 %v1032
      %v1080 = vunpack.c.l.b16 %v1033
      %v1081 = vunpack.c.h.b16 %v1033
      %v1082 = vpack.c.b16 %v1050, %v1050
      %v1083 = vpack.c.b16 %v1051, %v1051
      %v1084 = vpack.c.b16 %v1052, %v1052
      %v1085 = vpack.c.b16 %v1053, %v1053
      %v1086 = vpack.c.b16 %v1054, %v1054
      %v1087 = vpack.c.b16 %v1055, %v1055
      %v1088 = vpack.c.b16 %v1056, %v1056
      %v1089 = vpack.c.b16 %v1057, %v1057
      %v1090 = vpack.c.b16 %v1058, %v1058
      %v1091 = vpack.c.b16 %v1059, %v1059
      %v1092 = vpack.c.b16 %v1060, %v1060
      %v1093 = vpack.c.b16 %v1061, %v1061
      %v1094 = vpack.c.b16 %v1062, %v1062
      %v1095 = vpack.c.b16 %v1063, %v1063
      %v1096 = vpack.c.b16 %v1064, %v1064
      %v1097 = vpack.c.b16 %v1065, %v1065
      %v1098 = vpack.c.b16 %v1066, %v1066
      %v1099 = vpack.c.b16 %v1067, %v1067
      %v1100 = vpack.c.b16 %v1068, %v1068
      %v1101 = vpack.c.b16 %v1069, %v1069
      %v1102 = vpack.c.b16 %v1070, %v1070
      %v1103 = vpack.c.b16 %v1071, %v1071
      %v1104 = vpack.c.b16 %v1072, %v1072
      %v1105 = vpack.c.b16 %v1073, %v1073
      %v1106 = vpack.c.b16 %v1074, %v1074
      %v1107 = vpack.c.b16 %v1075, %v1075
      %v1108 = vpack.c.b16 %v1076, %v1076
      %v1109 = vpack.c.b16 %v1077, %v1077
      %v1110 = vpack.c.b16 %v1078, %v1078
      %v1111 = vpack.c.b16 %v1079, %v1079
      %v1112 = vpack.c.b16 %v1080, %v1080
      %v1113 = vpack.c.b16 %v1081, %v1081
      %1146 = vst [vmem:[#allocation12] sm:$0xf] %v1082
      %1147 = vst [vmem:[#allocation12 + $0x4] sm:$0xf] %v1083
      %1148 = vst [vmem:[#allocation12 + $0x8] sm:$0xf] %v1084
      %1149 = vst [vmem:[#allocation12 + $0xc] sm:$0xf] %v1085
      %1150 = vst [vmem:[#allocation12 + $0x10] sm:$0xf] %v1086
      %1151 = vst [vmem:[#allocation12 + $0x14] sm:$0xf] %v1087
      %1152 = vst [vmem:[#allocation12 + $0x18] sm:$0xf] %v1088
      %1153 = vst [vmem:[#allocation12 + $0x1c] sm:$0xf] %v1089
      %1154 = vst [vmem:[#allocation12 + $0x20] sm:$0xf] %v1090
      %1155 = vst [vmem:[#allocation12 + $0x24] sm:$0xf] %v1091
      %1156 = vst [vmem:[#allocation12 + $0x28] sm:$0xf] %v1092
      %1157 = vst [vmem:[#allocation12 + $0x2c] sm:$0xf] %v1093
      %1158 = vst [vmem:[#allocation12 + $0x30] sm:$0xf] %v1094
      %1159 = vst [vmem:[#allocation12 + $0x34] sm:$0xf] %v1095
      %1160 = vst [vmem:[#allocation12 + $0x38] sm:$0xf] %v1096
      %1161 = vst [vmem:[#allocation12 + $0x3c] sm:$0xf] %v1097
      %1162 = vst [vmem:[#allocation12 + $0x40] sm:$0xf] %v1098
      %1163 = vst [vmem:[#allocation12 + $0x44] sm:$0xf] %v1099
      %1164 = vst [vmem:[#allocation12 + $0x48] sm:$0xf] %v1100
      %1165 = vst [vmem:[#allocation12 + $0x4c] sm:$0xf] %v1101
      %1166 = vst [vmem:[#allocation12 + $0x50] sm:$0xf] %v1102
      %1167 = vst [vmem:[#allocation12 + $0x54] sm:$0xf] %v1103
      %1168 = vst [vmem:[#allocation12 + $0x58] sm:$0xf] %v1104
      %1169 = vst [vmem:[#allocation12 + $0x5c] sm:$0xf] %v1105
      %1170 = vst [vmem:[#allocation12 + $0x60] sm:$0xf] %v1106
      %1171 = vst [vmem:[#allocation12 + $0x64] sm:$0xf] %v1107
      %1172 = vst [vmem:[#allocation12 + $0x68] sm:$0xf] %v1108
      %1173 = vst [vmem:[#allocation12 + $0x6c] sm:$0xf] %v1109
      %1174 = vst [vmem:[#allocation12 + $0x70] sm:$0xf] %v1110
      %1175 = vst [vmem:[#allocation12 + $0x74] sm:$0xf] %v1111
      %1176 = vst [vmem:[#allocation12 + $0x78] sm:$0xf] %v1112
      %1177 = vst [vmem:[#allocation12 + $0x7c] sm:$0xf] %v1113
    $region41: #{tpu_custom_call.1} parent=1 // pred_fallthru
      _
    // Predicated region
    $region42: #{tpu_custom_call.1} parent=1 // pred_check
      _
    $region43: #{tpu_custom_call.1} parent=1 // pred_check_branch
      %1179 = sbr.rel (0) target = $region45
    $region44: #{tpu_custom_call.1} parent=1 // pred_region
      %s1181 = ssub.s32 2048, 2048
      %1182 = vsyncadd [#allocation8], %s1181
      %s1183 = sshll.u32 [#allocation12], 4
      %s1184 = int_to_ptr.vmem [resolvable:$true] %s1183
      %1189 = dma.vmem_to_hbm [thread:$0]  %s1184, 2048, %s6, [#allocation8], 64, 64, 4
    $region45: #{tpu_custom_call.1} parent=1 // pred_fallthru
      _
    // Predicated region
    $region46: #{tpu_custom_call.1} parent=1 // pred_check
      _
    $region47: #{tpu_custom_call.1} parent=1 // pred_check_branch
      %1191 = sbr.rel (0) target = $region49
    $region48: #{tpu_custom_call.1} parent=1 // pred_region
      %1192 = dma.done [#allocation8], 2048
    $region49: #{tpu_custom_call.1} parent=1 // pred_fallthru
      _
    %1193 = vsyncpa [#allocation7], 1
    %1194 = vsyncpa [#allocation10], 1
    %1195 = vsyncpa [#allocation8], 1

</llo_original>
